<compile_context>
chip_gen: v7x
topology: tpu7x:2x2x1
jax: 0.10.0
libtpu: 0.0.40
codegen_flags: <defaults>
</compile_context>

<pallas_src>
import functools

import jax
import jax.numpy as jnp
from jax.experimental import pallas as pl
from jax.experimental.pallas import tpu as pltpu


def agcn_kernel(s_ref, x_ref, w_ref, b_ref, o_ref, xw3_ref, *, K, N, C, TB, O_pad):
    """One batch-tile of the AGCN forward.

    s_ref  : (N, K*N)          bf16  S_wide[n, k*N+m] = S_k[n, m]        (constant)
    x_ref  : (1, TB*N, C)      bf16  batch tile, rows are (b_local, n)
    w_ref  : (C, K*O_pad)      bf16  W_cat[c, k*O_pad+o] = W[k*C+c, o]   (constant)
    b_ref  : (1, TB*O_pad)     f32   bias tiled per batch lane block      (constant)
    o_ref  : (1, N, TB*O_pad)  f32   output tile, cols are (b_local, o) — lane-dense
    xw3_ref: (K*N, TB*O_pad)   bf16  VMEM scratch: projected features, rows (k, m)
    """
    # ---- stage A: per-node projection for all k at once (one MXU matmul) ----
    xw = jnp.dot(x_ref[0], w_ref[...],
                 preferred_element_type=jnp.float32)            # (TB*N, K*O_pad)
    xw = xw.astype(jnp.bfloat16)

    # ---- rearrange rows (b,n)/col-blocks (k)  ->  rows (k,m)/col-blocks (b) ----
    # All slices are (N, O_pad) blocks: sublane-aligned rows, lane-aligned columns.
    for b in range(TB):
        for k in range(K):
            xw3_ref[k * N:(k + 1) * N, b * O_pad:(b + 1) * O_pad] = \
                xw[b * N:(b + 1) * N, k * O_pad:(k + 1) * O_pad]

    # ---- stage B: fused graph conv over (k, m) jointly (one MXU matmul) ----
    out = jnp.dot(s_ref[...], xw3_ref[...],
                  preferred_element_type=jnp.float32)           # (N, TB*O_pad), f32
    o_ref[0] = (out + b_ref[...]).astype(o_ref.dtype)           # bias add in f32


def build_support_set(supports, cheb_k):
    """Mirror the PyTorch Chebyshev construction exactly (f32, in jitted JAX glue)."""
    mats = []
    for s in supports:
        n = s.shape[0]
        ks = [jnp.eye(n, dtype=s.dtype), s]
        for _ in range(2, cheb_k):
            ks.append(2.0 * (s @ ks[-1]) - ks[-2])
        mats.extend(ks)
    return jnp.stack(mats, axis=0)  # (K, N, N)


def _pick_batch_tile(B):
    """Whole batch per step when small; several tiles for larger B (megacore sharding)."""
    for tb in (8, 4, 2, 1):
        if tb <= B and B % tb == 0:
            return tb
    return 1


@functools.partial(jax.jit, static_argnames=("cheb_k",))
def agcn_forward(x, supports_tuple, weights, bias, *, cheb_k):
    sup = build_support_set(list(supports_tuple), cheb_k)        # (K, N, N) f32
    B, N, C = x.shape
    K = sup.shape[0]
    O = weights.shape[1]
    O_pad = 128 * pl.cdiv(O, 128)

    TB = _pick_batch_tile(B)
    num_tiles = B // TB

    # bf16 MXU operands (accumulation stays f32 inside the kernel).
    # S_wide[n, k*N + m] = S_k[n, m]
    s_wide = sup.transpose(1, 0, 2).reshape(N, K * N).astype(jnp.bfloat16)
    # Batch-tile input, rows (b_local, n): (num_tiles, TB*N, C)
    xt = x.reshape(num_tiles, TB * N, C).astype(jnp.bfloat16)
    # W_cat[c, k*O_pad + o] = W[k*C + c, o], zero-padded along o to a lane multiple.
    w_cat = (jnp.pad(weights.reshape(K, C, O), ((0, 0), (0, 0), (0, O_pad - O)))
               .transpose(1, 0, 2)
               .reshape(C, K * O_pad)
               .astype(jnp.bfloat16))
    # Bias replicated once per batch lane block: (1, TB*O_pad)
    b_tile = (jnp.tile(jnp.pad(bias, (0, O_pad - O)), TB)
                .reshape(1, TB * O_pad)
                .astype(jnp.float32))

    flops = 2 * B * N * C * K * O_pad + 2 * B * K * N * N * O_pad
    bytes_accessed = (s_wide.size * 2 + xt.size * 2 + w_cat.size * 2
                      + b_tile.size * 4 + num_tiles * N * TB * O_pad * 4)

    kernel = functools.partial(agcn_kernel, K=K, N=N, C=C, TB=TB, O_pad=O_pad)

    out = pl.pallas_call(
        kernel,
        out_shape=jax.ShapeDtypeStruct((num_tiles, N, TB * O_pad), jnp.float32),
        grid_spec=pltpu.PrefetchScalarGridSpec(
            num_scalar_prefetch=0,
            grid=(num_tiles,),
            in_specs=[
                pl.BlockSpec((N, K * N), lambda t: (0, 0)),            # supports (constant)
                pl.BlockSpec((1, TB * N, C), lambda t: (t, 0, 0)),     # batch tile
                pl.BlockSpec((C, K * O_pad), lambda t: (0, 0)),        # weights (constant)
                pl.BlockSpec((1, TB * O_pad), lambda t: (0, 0)),       # bias (constant)
            ],
            out_specs=pl.BlockSpec((1, N, TB * O_pad), lambda t: (t, 0, 0)),
            scratch_shapes=[pltpu.VMEM((K * N, TB * O_pad), jnp.bfloat16)],
        ),
        compiler_params=pltpu.CompilerParams(
            dimension_semantics=("parallel",)),
        cost_estimate=pl.CostEstimate(
            flops=int(flops), transcendentals=0,
            bytes_accessed=int(bytes_accessed)),
    )(s_wide, xt, w_cat, b_tile)

    # (num_tiles, N, TB*O_pad) cols (b_local, o) -> (B, N, O); drop lane padding.
    out = (out.reshape(num_tiles, N, TB, O_pad)
              .transpose(0, 2, 1, 3)
              .reshape(B, N, O_pad)[:, :, :O])
    return out.astype(x.dtype)


def reference_forward(x, supports, weights, bias, cheb_k):
    """Pure-JAX f32 reference matching the PyTorch module exactly."""
    sup = build_support_set(supports, cheb_k)
    x_g = jnp.concatenate(
        [jnp.einsum("nm,bmc->bnc", sup[k], x) for k in range(sup.shape[0])], axis=-1)
    return jnp.einsum("bni,io->bno", x_g, weights) + bias


if __name__ == "__main__":
    # Small deterministic config consistent with the module.
    B, N = 2, 16          # batch, num nodes
    dim_in, dim_out = 4, 32
    cheb_k = 3
    n_supports = 2        # MegaCRN passes two supports -> weights has 2*cheb_k*dim_in rows

    key = jax.random.PRNGKey(0)
    kx, ks1, ks2, kw = jax.random.split(key, 4)

    x = jax.random.normal(kx, (B, N, dim_in), dtype=jnp.float32)

    # Two row-stochastic-ish supports (softmax of random logits), as MegaCRN does.
    s1 = jax.nn.softmax(jax.random.normal(ks1, (N, N), dtype=jnp.float32), axis=-1)
    s2 = jax.nn.softmax(jax.random.normal(ks2, (N, N), dtype=jnp.float32), axis=-1)
    supports = (s1, s2)

    # Parameters: xavier_normal_(weights), bias = 0  (deterministic in-script init).
    fan_in, fan_out = n_supports * cheb_k * dim_in, dim_out
    std = (2.0 / (fan_in + fan_out)) ** 0.5
    weights = std * jax.random.normal(kw, (fan_in, fan_out), dtype=jnp.float32)
    bias = jnp.zeros((fan_out,), dtype=jnp.float32)

    out = agcn_forward(x, supports, weights, bias, cheb_k=cheb_k)
    out = jax.block_until_ready(out)

    ref = reference_forward(x, list(supports), weights, bias, cheb_k)
    assert out.shape == (B, N, dim_out)
    # bf16 MXU inputs with f32 accumulation -> loosened tolerance vs the f32 reference.
    assert jnp.allclose(out, ref, atol=5e-2, rtol=5e-2), "mismatch vs reference"

    print("KERNEL_OK")
</pallas_src>

<mosaic_0001>
module attributes {stable_mosaic.version = 11 : i64} {
  func.func @agcn_kernel(%arg0: i32, %arg1: memref<16x96xbf16, #tpu.memory_space<vmem>>, %arg2: memref<1x32x4xbf16, #tpu.memory_space<vmem>>, %arg3: memref<4x768xbf16, #tpu.memory_space<vmem>>, %arg4: memref<1x256xf32, #tpu.memory_space<vmem>>, %arg5: memref<1x16x256xf32, #tpu.memory_space<vmem>>, %arg6: memref<96x256xbf16, #tpu.memory_space<vmem>>) attributes {dimension_semantics = [#tpu.dimension_semantics<parallel>], iteration_bounds = array<i64: 1>, scalar_prefetch = 0 : i64, scratch_operands = 1 : i64, tpu.core_type = #tpu.core_type<tc>, window_params = [{pipeline_mode = #tpu.pipeline_mode<synchronous>, transform_indices = @transform_0, window_bounds = array<i64: 16, 96>}, {transform_indices = @transform_1, window_bounds = array<i64: 1, 32, 4>}, {pipeline_mode = #tpu.pipeline_mode<synchronous>, transform_indices = @transform_2, window_bounds = array<i64: 4, 768>}, {pipeline_mode = #tpu.pipeline_mode<synchronous>, transform_indices = @transform_3, window_bounds = array<i64: 1, 256>}, {transform_indices = @transform_4, window_bounds = array<i64: 1, 16, 256>}]} {
    %c0 = arith.constant 0 : index
    %c0_0 = arith.constant 0 : index
    %c0_1 = arith.constant 0 : index
    %0 = vector.load %arg2[%c0, %c0_0, %c0_1] : memref<1x32x4xbf16, #tpu.memory_space<vmem>>, vector<1x32x4xbf16>
    %1 = vector.shape_cast %0 : vector<1x32x4xbf16> to vector<32x4xbf16>
    %c0_2 = arith.constant 0 : index
    %c0_3 = arith.constant 0 : index
    %2 = vector.load %arg3[%c0_2, %c0_3] : memref<4x768xbf16, #tpu.memory_space<vmem>>, vector<4x768xbf16>
    %cst = arith.constant dense<0.000000e+00> : vector<32x768xf32>
    %3 = tpu.matmul %1, %2, %cst {dimension_numbers = #tpu.dot_dimension_numbers<[1], [0], [0], [1], [0, 0, 1, 1], [], []>} : vector<32x4xbf16>, vector<4x768xbf16>, vector<32x768xf32> -> vector<32x768xf32>
    %4 = arith.truncf %3 : vector<32x768xf32> to vector<32x768xbf16>
    %5 = vector.extract_strided_slice %4 {offsets = [0, 0], sizes = [16, 128], strides = [1, 1]} : vector<32x768xbf16> to vector<16x128xbf16>
    %c0_4 = arith.constant 0 : index
    %c0_5 = arith.constant 0 : index
    %6 = vector.load %arg6[%c0_4, %c0_5] : memref<96x256xbf16, #tpu.memory_space<vmem>>, vector<16x128xbf16>
    tpu.vector_store %arg6[%c0_4, %c0_5], %5 {strides = array<i32>} : memref<96x256xbf16, #tpu.memory_space<vmem>>, vector<16x128xbf16>,
    %7 = vector.extract_strided_slice %4 {offsets = [0, 128], sizes = [16, 128], strides = [1, 1]} : vector<32x768xbf16> to vector<16x128xbf16>
    %c16 = arith.constant 16 : index
    %c0_6 = arith.constant 0 : index
    %8 = vector.load %arg6[%c16, %c0_6] : memref<96x256xbf16, #tpu.memory_space<vmem>>, vector<16x128xbf16>
    tpu.vector_store %arg6[%c16, %c0_6], %7 {strides = array<i32>} : memref<96x256xbf16, #tpu.memory_space<vmem>>, vector<16x128xbf16>,
    %9 = vector.extract_strided_slice %4 {offsets = [0, 256], sizes = [16, 128], strides = [1, 1]} : vector<32x768xbf16> to vector<16x128xbf16>
    %c32 = arith.constant 32 : index
    %c0_7 = arith.constant 0 : index
    %10 = vector.load %arg6[%c32, %c0_7] : memref<96x256xbf16, #tpu.memory_space<vmem>>, vector<16x128xbf16>
    tpu.vector_store %arg6[%c32, %c0_7], %9 {strides = array<i32>} : memref<96x256xbf16, #tpu.memory_space<vmem>>, vector<16x128xbf16>,
    %11 = vector.extract_strided_slice %4 {offsets = [0, 384], sizes = [16, 128], strides = [1, 1]} : vector<32x768xbf16> to vector<16x128xbf16>
    %c48 = arith.constant 48 : index
    %c0_8 = arith.constant 0 : index
    %12 = vector.load %arg6[%c48, %c0_8] : memref<96x256xbf16, #tpu.memory_space<vmem>>, vector<16x128xbf16>
    tpu.vector_store %arg6[%c48, %c0_8], %11 {strides = array<i32>} : memref<96x256xbf16, #tpu.memory_space<vmem>>, vector<16x128xbf16>,
    %13 = vector.extract_strided_slice %4 {offsets = [0, 512], sizes = [16, 128], strides = [1, 1]} : vector<32x768xbf16> to vector<16x128xbf16>
    %c64 = arith.constant 64 : index
    %c0_9 = arith.constant 0 : index
    %14 = vector.load %arg6[%c64, %c0_9] : memref<96x256xbf16, #tpu.memory_space<vmem>>, vector<16x128xbf16>
    tpu.vector_store %arg6[%c64, %c0_9], %13 {strides = array<i32>} : memref<96x256xbf16, #tpu.memory_space<vmem>>, vector<16x128xbf16>,
    %15 = vector.extract_strided_slice %4 {offsets = [0, 640], sizes = [16, 128], strides = [1, 1]} : vector<32x768xbf16> to vector<16x128xbf16>
    %c80 = arith.constant 80 : index
    %c0_10 = arith.constant 0 : index
    %16 = vector.load %arg6[%c80, %c0_10] : memref<96x256xbf16, #tpu.memory_space<vmem>>, vector<16x128xbf16>
    tpu.vector_store %arg6[%c80, %c0_10], %15 {strides = array<i32>} : memref<96x256xbf16, #tpu.memory_space<vmem>>, vector<16x128xbf16>,
    %17 = vector.extract_strided_slice %4 {offsets = [16, 0], sizes = [16, 128], strides = [1, 1]} : vector<32x768xbf16> to vector<16x128xbf16>
    %c0_11 = arith.constant 0 : index
    %c128 = arith.constant 128 : index
    %18 = vector.load %arg6[%c0_11, %c128] : memref<96x256xbf16, #tpu.memory_space<vmem>>, vector<16x128xbf16>
    tpu.vector_store %arg6[%c0_11, %c128], %17 {strides = array<i32>} : memref<96x256xbf16, #tpu.memory_space<vmem>>, vector<16x128xbf16>,
    %19 = vector.extract_strided_slice %4 {offsets = [16, 128], sizes = [16, 128], strides = [1, 1]} : vector<32x768xbf16> to vector<16x128xbf16>
    %c16_12 = arith.constant 16 : index
    %c128_13 = arith.constant 128 : index
    %20 = vector.load %arg6[%c16_12, %c128_13] : memref<96x256xbf16, #tpu.memory_space<vmem>>, vector<16x128xbf16>
    tpu.vector_store %arg6[%c16_12, %c128_13], %19 {strides = array<i32>} : memref<96x256xbf16, #tpu.memory_space<vmem>>, vector<16x128xbf16>,
    %21 = vector.extract_strided_slice %4 {offsets = [16, 256], sizes = [16, 128], strides = [1, 1]} : vector<32x768xbf16> to vector<16x128xbf16>
    %c32_14 = arith.constant 32 : index
    %c128_15 = arith.constant 128 : index
    %22 = vector.load %arg6[%c32_14, %c128_15] : memref<96x256xbf16, #tpu.memory_space<vmem>>, vector<16x128xbf16>
    tpu.vector_store %arg6[%c32_14, %c128_15], %21 {strides = array<i32>} : memref<96x256xbf16, #tpu.memory_space<vmem>>, vector<16x128xbf16>,
    %23 = vector.extract_strided_slice %4 {offsets = [16, 384], sizes = [16, 128], strides = [1, 1]} : vector<32x768xbf16> to vector<16x128xbf16>
    %c48_16 = arith.constant 48 : index
    %c128_17 = arith.constant 128 : index
    %24 = vector.load %arg6[%c48_16, %c128_17] : memref<96x256xbf16, #tpu.memory_space<vmem>>, vector<16x128xbf16>
    tpu.vector_store %arg6[%c48_16, %c128_17], %23 {strides = array<i32>} : memref<96x256xbf16, #tpu.memory_space<vmem>>, vector<16x128xbf16>,
    %25 = vector.extract_strided_slice %4 {offsets = [16, 512], sizes = [16, 128], strides = [1, 1]} : vector<32x768xbf16> to vector<16x128xbf16>
    %c64_18 = arith.constant 64 : index
    %c128_19 = arith.constant 128 : index
    %26 = vector.load %arg6[%c64_18, %c128_19] : memref<96x256xbf16, #tpu.memory_space<vmem>>, vector<16x128xbf16>
    tpu.vector_store %arg6[%c64_18, %c128_19], %25 {strides = array<i32>} : memref<96x256xbf16, #tpu.memory_space<vmem>>, vector<16x128xbf16>,
    %27 = vector.extract_strided_slice %4 {offsets = [16, 640], sizes = [16, 128], strides = [1, 1]} : vector<32x768xbf16> to vector<16x128xbf16>
    %c80_20 = arith.constant 80 : index
    %c128_21 = arith.constant 128 : index
    %28 = vector.load %arg6[%c80_20, %c128_21] : memref<96x256xbf16, #tpu.memory_space<vmem>>, vector<16x128xbf16>
    tpu.vector_store %arg6[%c80_20, %c128_21], %27 {strides = array<i32>} : memref<96x256xbf16, #tpu.memory_space<vmem>>, vector<16x128xbf16>,
    %c0_22 = arith.constant 0 : index
    %c0_23 = arith.constant 0 : index
    %29 = vector.load %arg1[%c0_22, %c0_23] : memref<16x96xbf16, #tpu.memory_space<vmem>>, vector<16x96xbf16>
    %c0_24 = arith.constant 0 : index
    %c0_25 = arith.constant 0 : index
    %30 = vector.load %arg6[%c0_24, %c0_25] : memref<96x256xbf16, #tpu.memory_space<vmem>>, vector<96x256xbf16>
    %cst_26 = arith.constant dense<0.000000e+00> : vector<16x256xf32>
    %31 = tpu.matmul %29, %30, %cst_26 {dimension_numbers = #tpu.dot_dimension_numbers<[1], [0], [0], [1], [0, 0, 1, 1], [], []>} : vector<16x96xbf16>, vector<96x256xbf16>, vector<16x256xf32> -> vector<16x256xf32>
    %c0_27 = arith.constant 0 : index
    %c0_28 = arith.constant 0 : index
    %32 = vector.load %arg4[%c0_27, %c0_28] : memref<1x256xf32, #tpu.memory_space<vmem>>, vector<1x256xf32>
    %33 = vector.broadcast %32 : vector<1x256xf32> to vector<16x256xf32>
    %34 = arith.addf %31, %33 : vector<16x256xf32>
    %c0_29 = arith.constant 0 : index
    %c0_30 = arith.constant 0 : index
    %c0_31 = arith.constant 0 : index
    %35 = vector.load %arg5[%c0_29, %c0_30, %c0_31] : memref<1x16x256xf32, #tpu.memory_space<vmem>>, vector<1x16x256xf32>
    %36 = vector.shape_cast %35 : vector<1x16x256xf32> to vector<16x256xf32>
    %37 = vector.shape_cast %34 : vector<16x256xf32> to vector<1x16x256xf32>
    tpu.vector_store %arg5[%c0_29, %c0_30, %c0_31], %37 {strides = array<i32>} : memref<1x16x256xf32, #tpu.memory_space<vmem>>, vector<1x16x256xf32>,
    return
  }
  func.func @transform_0(%arg0: i32) -> (i32, i32) {
    %c0_i32 = arith.constant 0 : i32
    %c0_i32_0 = arith.constant 0 : i32
    %c0_i32_1 = arith.constant 0 : i32
    return %c0_i32, %c0_i32_0 : i32, i32
  }
  func.func @transform_1(%arg0: i32) -> (i32, i32, i32) {
    %c0_i32 = arith.constant 0 : i32
    %c0_i32_0 = arith.constant 0 : i32
    %c0_i32_1 = arith.constant 0 : i32
    return %arg0, %c0_i32, %c0_i32_0 : i32, i32, i32
  }
  func.func @transform_2(%arg0: i32) -> (i32, i32) {
    %c0_i32 = arith.constant 0 : i32
    %c0_i32_0 = arith.constant 0 : i32
    %c0_i32_1 = arith.constant 0 : i32
    return %c0_i32, %c0_i32_0 : i32, i32
  }
  func.func @transform_3(%arg0: i32) -> (i32, i32) {
    %c0_i32 = arith.constant 0 : i32
    %c0_i32_0 = arith.constant 0 : i32
    %c0_i32_1 = arith.constant 0 : i32
    return %c0_i32, %c0_i32_0 : i32, i32
  }
  func.func @transform_4(%arg0: i32) -> (i32, i32, i32) {
    %c0_i32 = arith.constant 0 : i32
    %c0_i32_0 = arith.constant 0 : i32
    %c0_i32_1 = arith.constant 0 : i32
    return %arg0, %c0_i32, %c0_i32_0 : i32, i32, i32
  }
}

</mosaic_0001>

<llo_original>
// kernel: tile.8
$region0: #{tile.8}
  #allocation0 [shape = 's32[1]{0}', space=sflag, size = 0x4, scoped, tag = 'scoped memory for tile.8']
  %s0 = inlined_call_operand.vmem [shape: f32[128], index: 0, kind: input, shape index: {}]
  %s1 = inlined_call_operand.vmem [shape: f32[2,128], index: 1, kind: output, shape index: {}]
  // Predicated region
  $region2: #{tile.8} parent=0 // pred_check
    _
  $region3: #{tile.8} parent=0 // pred_check_branch
    %3 = sbr.rel (0) target = $region5
  $region4: #{tile.8} parent=0 // pred_region
    _
  $region5: #{tile.8} parent=0 // pred_fallthru
    _
  %v4 = vld [vmem:[%s0] ss:$0 sm:$0xff]
  %5 = vst [vmem:[%s1] sm:$0x3] %v4

// kernel: agcn_forward.1
$region0: #{agcn_forward.1}
  #allocation0 [shape = 'u32[]', space=smem, size = 0x4, offset = 0x4, fixed_abs, tag = 'smem constant byte address 0x4 - core index']
  #allocation1 [shape = 'u32[144,128]{1,0:T(1,128)}', space=vmem, size = 0x12000, scoped, tag = 'internal scratch']
  #allocation2 [shape = 'bf16[96,256]{1,0:T(16,128)(2,1)}', space=vmem, size = 0xc000, scoped, tag = 'scratch operand']
  %s0 = inlined_call_operand.vmem [shape: bf16[16,96], index: 0, kind: input, shape index: {}]
  %s1 = inlined_call_operand.vmem [shape: bf16[1,32,4], index: 1, kind: input, shape index: {}]
  %s2 = inlined_call_operand.vmem [shape: bf16[4,768], index: 2, kind: input, shape index: {}]
  %s3 = inlined_call_operand.vmem [shape: f32[1,256], index: 3, kind: input, shape index: {}]
  %s4 = inlined_call_operand.vmem [shape: f32[1,16,256], index: 4, kind: output, shape index: {}]
  %s5 = sld [smem:[#allocation0]]
  $region26: #{agcn_forward.1} parent=0
    _
  %s7 = ssub.s32 1, %s5
  %s8 = scalar_select 0, %s7, %s5
  // Predicated region
  $region2: #{agcn_forward.1} parent=0 // pred_check
    _
  $region3: #{agcn_forward.1} parent=0 // pred_check_branch
    %10 = sbr.rel (0) target = $region5
  $region4: #{agcn_forward.1} parent=0 // pred_region
    _
  $region5: #{agcn_forward.1} parent=0 // pred_fallthru
    _
  // Predicated region
  $region6: #{agcn_forward.1} parent=0 // pred_check
    _
  $region7: #{agcn_forward.1} parent=0 // pred_check_branch
    %12 = sbr.rel (0) target = $region9
  $region8: #{agcn_forward.1} parent=0 // pred_region
    _
  $region9: #{agcn_forward.1} parent=0 // pred_fallthru
    _
  // Predicated region
  $region10: #{agcn_forward.1} parent=0 // pred_check
    _
  $region11: #{agcn_forward.1} parent=0 // pred_check_branch
    %14 = sbr.rel (0) target = $region13
  $region12: #{agcn_forward.1} parent=0 // pred_region
    _
  $region13: #{agcn_forward.1} parent=0 // pred_fallthru
    _
  // Predicated region
  $region14: #{agcn_forward.1} parent=0 // pred_check
    _
  $region15: #{agcn_forward.1} parent=0 // pred_check_branch
    %16 = sbr.rel (0) target = $region17
  $region16: #{agcn_forward.1} parent=0 // pred_region
    _
  $region17: #{agcn_forward.1} parent=0 // pred_fallthru
    _
  %v18 = vld [vmem:[%s1] sm:$0xf]
  %v19 = vld [vmem:[%s1 + $0x4] sm:$0xf]
  %v20 = vld [vmem:[%s1 + $0x8] sm:$0xf]
  %v21 = vld [vmem:[%s1 + $0xc] sm:$0xf]
  %v22 = vld [vmem:[%s2] sm:$0xff]
  %v23 = vld [vmem:[%s2 + $0x8] sm:$0xf]
  %v28 = vunpack.c.l.b16 %v18
  %v29 = vunpack.c.l.b16 %v19
  %v30 = vunpack.c.l.b16 %v20
  %v31 = vunpack.c.l.b16 %v21
  %v32 = vpack.c.b16 %v29, %v28
  %v33 = vpack.c.b16 %v31, %v30
  %v36 = vcombine.high %v22, %v22
  %v38 = vunpack.c.l.s4 1983009808
  %v39 = vunpack.c.0.s8 %v38
  %v40 = vlaneseq
  %v41 = vshrl.u32 %v40, 7
  %v42 = vsub.s32 %v39, %v41
  %v43 = vrot.slane %v22, %v42
  %v45 = vunpack.c.l.s4 1983009808
  %v46 = vunpack.c.0.s8 %v45
  %v47 = vlaneseq
  %v48 = vshrl.u32 %v47, 7
  %v49 = vsub.s32 %v46, %v48
  %v50 = vrot.slane %v36, %v49
  %v51 = vcombine.high %v43, %v43
  %v52 = vcombine.high %v50, %v50
  %v54 = vunpack.c.l.s4 1983009808
  %v55 = vunpack.c.0.s8 %v54
  %v56 = vlaneseq
  %v57 = vshrl.u32 %v56, 7
  %v58 = vsub.s32 %v55, %v57
  %v59 = vrot.slane %v23, %v58
  %v60 = vcombine.high %v59, %v59
  %vm61 = vcmask 31744
  %v63 = vsel %vm61, %v32, 0
  %v66 = vsel %vm61, %v33, 0
  %vm68 = vcmask 1041408
  %v70 = vsel %vm68, %v43, 0
  %v73 = vsel %vm68, %v51, 0
  %v76 = vsel %vm68, %v50, 0
  %v79 = vsel %vm68, %v52, 0
  %v82 = vsel %vm68, %v59, 0
  %v85 = vsel %vm68, %v60, 0
  %87 = vmatprep.subr.bf16.mxu0 %v73
  %88 = vmatpush1.bf16.msra.mxu0 %v70
  %89 = vmatprep.subr.bf16.mxu0 0
  %90 = vmatpush1.bf16.msra.mxu0 0
  %91 = vmatprep.subr.bf16.mxu0 0
  %92 = vmatpush1.bf16.msra.mxu0 0
  %93 = vmatprep.subr.bf16.mxu0 0
  %94 = vmatpush1.bf16.msra.mxu0 0
  %95 = vmatprep.subr.bf16.mxu0 0
  %96 = vmatpush1.bf16.msra.mxu0 0
  %97 = vmatprep.subr.bf16.mxu0 0
  %98 = vmatpush1.bf16.msra.mxu0 0
  %99 = vmatprep.subr.bf16.mxu0 0
  %100 = vmatpush1.bf16.msra.mxu0 0
  %101 = vmatprep.subr.bf16.mxu0 0
  %102 = vmatpush1.bf16.msra.mxu0 0
  %103 = vmatprep.subr.bf16.mxu0 0
  %104 = vmatpush1.bf16.msra.mxu0 0
  %105 = vmatprep.subr.bf16.mxu0 0
  %106 = vmatpush1.bf16.msra.mxu0 0
  %107 = vmatprep.subr.bf16.mxu0 0
  %108 = vmatpush1.bf16.msra.mxu0 0
  %109 = vmatprep.subr.bf16.mxu0 0
  %110 = vmatpush1.bf16.msra.mxu0 0
  %111 = vmatprep.subr.bf16.mxu0 0
  %112 = vmatpush1.bf16.msra.mxu0 0
  %113 = vmatprep.subr.bf16.mxu0 0
  %114 = vmatpush1.bf16.msra.mxu0 0
  %115 = vmatprep.subr.bf16.mxu0 0
  %116 = vmatpush1.bf16.msra.mxu0 0
  %117 = vmatprep.subr.bf16.mxu0 0
  %118 = vmatpush1.bf16.msra.mxu0 0
  %119 = vmatprep.mubr.bf16.mxu0 0
  %120 = vmatmul.mubr.bf16.gmra.mrb[0].mxu0 %v63
  %v121 = vpop.f32.mrb[0].mxu0
  %v122 = vadd.f32 0.0, %v121
  %v123 = vpop.f32.mrb[0].mxu0
  %v124 = vadd.f32 0.0, %v123
  %v125 = vpop.f32.mrb[0].mxu0
  %v126 = vadd.f32 0.0, %v125
  %v127 = vpop.f32.mrb[0].mxu0
  %v128 = vadd.f32 0.0, %v127
  %129 = vmatprep.mubr.bf16.mxu0 0
  %130 = vmatmul.mubr.bf16.gmra.mrb[0].mxu0 %v66
  %v131 = vpop.f32.mrb[0].mxu0
  %v132 = vadd.f32 0.0, %v131
  %v133 = vpop.f32.mrb[0].mxu0
  %v134 = vadd.f32 0.0, %v133
  %v135 = vpop.f32.mrb[0].mxu0
  %v136 = vadd.f32 0.0, %v135
  %v137 = vpop.f32.mrb[0].mxu0
  %v138 = vadd.f32 0.0, %v137
  %139 = vdwg.mxu0
  %140 = vmatprep.subr.bf16.mxu0 %v79
  %141 = vmatpush1.bf16.msra.mxu0 %v76
  %142 = vmatprep.subr.bf16.mxu0 0
  %143 = vmatpush1.bf16.msra.mxu0 0
  %144 = vmatprep.subr.bf16.mxu0 0
  %145 = vmatpush1.bf16.msra.mxu0 0
  %146 = vmatprep.subr.bf16.mxu0 0
  %147 = vmatpush1.bf16.msra.mxu0 0
  %148 = vmatprep.subr.bf16.mxu0 0
  %149 = vmatpush1.bf16.msra.mxu0 0
  %150 = vmatprep.subr.bf16.mxu0 0
  %151 = vmatpush1.bf16.msra.mxu0 0
  %152 = vmatprep.subr.bf16.mxu0 0
  %153 = vmatpush1.bf16.msra.mxu0 0
  %154 = vmatprep.subr.bf16.mxu0 0
  %155 = vmatpush1.bf16.msra.mxu0 0
  %156 = vmatprep.subr.bf16.mxu0 0
  %157 = vmatpush1.bf16.msra.mxu0 0
  %158 = vmatprep.subr.bf16.mxu0 0
  %159 = vmatpush1.bf16.msra.mxu0 0
  %160 = vmatprep.subr.bf16.mxu0 0
  %161 = vmatpush1.bf16.msra.mxu0 0
  %162 = vmatprep.subr.bf16.mxu0 0
  %163 = vmatpush1.bf16.msra.mxu0 0
  %164 = vmatprep.subr.bf16.mxu0 0
  %165 = vmatpush1.bf16.msra.mxu0 0
  %166 = vmatprep.subr.bf16.mxu0 0
  %167 = vmatpush1.bf16.msra.mxu0 0
  %168 = vmatprep.subr.bf16.mxu0 0
  %169 = vmatpush1.bf16.msra.mxu0 0
  %170 = vmatprep.subr.bf16.mxu0 0
  %171 = vmatpush1.bf16.msra.mxu0 0
  %172 = vmatprep.mubr.bf16.mxu0 0
  %173 = vmatmul.mubr.bf16.gmra.mrb[0].mxu0 %v63
  %v174 = vpop.f32.mrb[0].mxu0
  %v175 = vadd.f32 0.0, %v174
  %v176 = vpop.f32.mrb[0].mxu0
  %v177 = vadd.f32 0.0, %v176
  %v178 = vpop.f32.mrb[0].mxu0
  %v179 = vadd.f32 0.0, %v178
  %v180 = vpop.f32.mrb[0].mxu0
  %v181 = vadd.f32 0.0, %v180
  %182 = vmatprep.mubr.bf16.mxu0 0
  %183 = vmatmul.mubr.bf16.gmra.mrb[0].mxu0 %v66
  %v184 = vpop.f32.mrb[0].mxu0
  %v185 = vadd.f32 0.0, %v184
  %v186 = vpop.f32.mrb[0].mxu0
  %v187 = vadd.f32 0.0, %v186
  %v188 = vpop.f32.mrb[0].mxu0
  %v189 = vadd.f32 0.0, %v188
  %v190 = vpop.f32.mrb[0].mxu0
  %v191 = vadd.f32 0.0, %v190
  %192 = vdwg.mxu0
  %193 = vmatprep.subr.bf16.mxu0 %v85
  %194 = vmatpush1.bf16.msra.mxu0 %v82
  %195 = vmatprep.subr.bf16.mxu0 0
  %196 = vmatpush1.bf16.msra.mxu0 0
  %197 = vmatprep.subr.bf16.mxu0 0
  %198 = vmatpush1.bf16.msra.mxu0 0
  %199 = vmatprep.subr.bf16.mxu0 0
  %200 = vmatpush1.bf16.msra.mxu0 0
  %201 = vmatprep.subr.bf16.mxu0 0
  %202 = vmatpush1.bf16.msra.mxu0 0
  %203 = vmatprep.subr.bf16.mxu0 0
  %204 = vmatpush1.bf16.msra.mxu0 0
  %205 = vmatprep.subr.bf16.mxu0 0
  %206 = vmatpush1.bf16.msra.mxu0 0
  %207 = vmatprep.subr.bf16.mxu0 0
  %208 = vmatpush1.bf16.msra.mxu0 0
  %209 = vmatprep.subr.bf16.mxu0 0
  %210 = vmatpush1.bf16.msra.mxu0 0
  %211 = vmatprep.subr.bf16.mxu0 0
  %212 = vmatpush1.bf16.msra.mxu0 0
  %213 = vmatprep.subr.bf16.mxu0 0
  %214 = vmatpush1.bf16.msra.mxu0 0
  %215 = vmatprep.subr.bf16.mxu0 0
  %216 = vmatpush1.bf16.msra.mxu0 0
  %217 = vmatprep.subr.bf16.mxu0 0
  %218 = vmatpush1.bf16.msra.mxu0 0
  %219 = vmatprep.subr.bf16.mxu0 0
  %220 = vmatpush1.bf16.msra.mxu0 0
  %221 = vmatprep.subr.bf16.mxu0 0
  %222 = vmatpush1.bf16.msra.mxu0 0
  %223 = vmatprep.subr.bf16.mxu0 0
  %224 = vmatpush1.bf16.msra.mxu0 0
  %225 = vmatprep.mubr.bf16.mxu0 0
  %226 = vmatmul.mubr.bf16.gmra.mrb[0].mxu0 %v63
  %v227 = vpop.f32.mrb[0].mxu0
  %v228 = vadd.f32 0.0, %v227
  %v229 = vpop.f32.mrb[0].mxu0
  %v230 = vadd.f32 0.0, %v229
  %v231 = vpop.f32.mrb[0].mxu0
  %v232 = vadd.f32 0.0, %v231
  %v233 = vpop.f32.mrb[0].mxu0
  %v234 = vadd.f32 0.0, %v233
  %235 = vmatprep.mubr.bf16.mxu0 0
  %236 = vmatmul.mubr.bf16.gmra.mrb[0].mxu0 %v66
  %v237 = vpop.f32.mrb[0].mxu0
  %v238 = vadd.f32 0.0, %v237
  %v239 = vpop.f32.mrb[0].mxu0
  %v240 = vadd.f32 0.0, %v239
  %v241 = vpop.f32.mrb[0].mxu0
  %v242 = vadd.f32 0.0, %v241
  %v243 = vpop.f32.mrb[0].mxu0
  %v244 = vadd.f32 0.0, %v243
  %245 = vdwg.mxu0
  %v246 = vpack.c.bf16 %v126, %v122
  %v247 = vpack.c.bf16 %v128, %v124
  %v248 = vpack.c.bf16 %v179, %v175
  %v249 = vpack.c.bf16 %v181, %v177
  %v250 = vpack.c.bf16 %v232, %v228
  %v251 = vpack.c.bf16 %v234, %v230
  %v252 = vpack.c.bf16 %v136, %v132
  %v253 = vpack.c.bf16 %v138, %v134
  %v254 = vpack.c.bf16 %v189, %v185
  %v255 = vpack.c.bf16 %v191, %v187
  %v256 = vpack.c.bf16 %v242, %v238
  %v257 = vpack.c.bf16 %v244, %v240
  %258 = vst [vmem:[#allocation2] sm:$0xff] %v246
  %259 = vst [vmem:[#allocation2 + $0x10] sm:$0xff] %v247
  %260 = vst [vmem:[#allocation2 + $0x20] sm:$0xff] %v248
  %261 = vst [vmem:[#allocation2 + $0x30] sm:$0xff] %v249
  %262 = vst [vmem:[#allocation2 + $0x40] sm:$0xff] %v250
  %263 = vst [vmem:[#allocation2 + $0x50] sm:$0xff] %v251
  %264 = vst [vmem:[#allocation2 + $0x8] sm:$0xff] %v252
  %265 = vst [vmem:[#allocation2 + $0x18] sm:$0xff] %v253
  %266 = vst [vmem:[#allocation2 + $0x28] sm:$0xff] %v254
  %267 = vst [vmem:[#allocation2 + $0x38] sm:$0xff] %v255
  %268 = vst [vmem:[#allocation2 + $0x48] sm:$0xff] %v256
  %269 = vst [vmem:[#allocation2 + $0x58] sm:$0xff] %v257
  %v270 = vld [vmem:[%s0] sm:$0xf]
  %v271 = vld [vmem:[%s0 + $0x4] sm:$0xf]
  %v272 = vld [vmem:[#allocation2] sm:$0xff]
  %v273 = vld [vmem:[#allocation2 + $0x8] sm:$0xff]
  %v274 = vld [vmem:[#allocation2 + $0x10] sm:$0xff]
  %v275 = vld [vmem:[#allocation2 + $0x18] sm:$0xff]
  %v276 = vld [vmem:[#allocation2 + $0x20] sm:$0xff]
  %v277 = vld [vmem:[#allocation2 + $0x28] sm:$0xff]
  %v278 = vld [vmem:[#allocation2 + $0x30] sm:$0xff]
  %v279 = vld [vmem:[#allocation2 + $0x38] sm:$0xff]
  %v280 = vld [vmem:[#allocation2 + $0x40] sm:$0xff]
  %v281 = vld [vmem:[#allocation2 + $0x48] sm:$0xff]
  %v282 = vld [vmem:[#allocation2 + $0x50] sm:$0xff]
  %v283 = vld [vmem:[#allocation2 + $0x58] sm:$0xff]
  %v284 = vld [vmem:[%s3] sm:$0x3]
  %v286 = vlaneseq
  %v287 = vshrl.u32 %v286, 7
  %v288 = vsub.s32 0, %v287
  %v289 = vrot.slane %v284, %v288
  %v290 = vlaneseq
  %v291 = vshrl.u32 %v290, 7
  %v292 = vsub.s32 1, %v291
  %v293 = vrot.slane %v284, %v292
  %v298 = vunpack.c.l.b16 %v270
  %v299 = vunpack.c.l.b16 %v271
  %v300 = vpack.c.b16 %v299, %v298
  %vm301 = vcmask 785408
  %v303 = vsel %vm301, %v300, 0
  %305 = vmatprep.subr.bf16.mxu0 %v273
  %306 = vmatpush1.bf16.msra.mxu0 %v272
  %307 = vmatprep.subr.bf16.mxu0 %v275
  %308 = vmatpush1.bf16.msra.mxu0 %v274
  %309 = vmatprep.subr.bf16.mxu0 %v277
  %310 = vmatpush1.bf16.msra.mxu0 %v276
  %311 = vmatprep.subr.bf16.mxu0 %v279
  %312 = vmatpush1.bf16.msra.mxu0 %v278
  %313 = vmatprep.subr.bf16.mxu0 %v281
  %314 = vmatpush1.bf16.msra.mxu0 %v280
  %315 = vmatprep.subr.bf16.mxu0 %v283
  %316 = vmatpush1.bf16.msra.mxu0 %v282
  %317 = vmatprep.subr.bf16.mxu0 0
  %318 = vmatpush1.bf16.msra.mxu0 0
  %319 = vmatprep.subr.bf16.mxu0 0
  %320 = vmatpush1.bf16.msra.mxu0 0
  %321 = vmatprep.subr.bf16.mxu0 0
  %322 = vmatpush1.bf16.msra.mxu0 0
  %323 = vmatprep.subr.bf16.mxu0 0
  %324 = vmatpush1.bf16.msra.mxu0 0
  %325 = vmatprep.subr.bf16.mxu0 0
  %326 = vmatpush1.bf16.msra.mxu0 0
  %327 = vmatprep.subr.bf16.mxu0 0
  %328 = vmatpush1.bf16.msra.mxu0 0
  %329 = vmatprep.subr.bf16.mxu0 0
  %330 = vmatpush1.bf16.msra.mxu0 0
  %331 = vmatprep.subr.bf16.mxu0 0
  %332 = vmatpush1.bf16.msra.mxu0 0
  %333 = vmatprep.subr.bf16.mxu0 0
  %334 = vmatpush1.bf16.msra.mxu0 0
  %335 = vmatprep.subr.bf16.mxu0 0
  %336 = vmatpush1.bf16.msra.mxu0 0
  %337 = vmatprep.mubr.bf16.mxu0 0
  %338 = vmatmul.mubr.bf16.gmra.mrb[0].mxu0 %v303
  %v339 = vpop.f32.mrb[0].mxu0
  %v340 = vadd.f32 %v289, %v339
  %v341 = vpop.f32.mrb[0].mxu0
  %v342 = vadd.f32 %v293, %v341
  %v343 = vpop.f32.mrb[0].mxu0
  %v344 = vadd.f32 %v289, %v343
  %v345 = vpop.f32.mrb[0].mxu0
  %v346 = vadd.f32 %v293, %v345
  %347 = vdwg.mxu0
  %348 = vst [vmem:[%s4] sm:$0xff] %v340
  %349 = vst [vmem:[%s4 + $0x8] sm:$0xff] %v342
  %350 = vst [vmem:[%s4 + $0x10] sm:$0xff] %v344
  %351 = vst [vmem:[%s4 + $0x18] sm:$0xff] %v346
  // Predicated region
  $region18: #{agcn_forward.1} parent=0 // pred_check
    _
  $region19: #{agcn_forward.1} parent=0 // pred_check_branch
    %353 = sbr.rel (0) target = $region21
  $region20: #{agcn_forward.1} parent=0 // pred_region
    _
  $region21: #{agcn_forward.1} parent=0 // pred_fallthru
    _
  // Predicated region
  $region22: #{agcn_forward.1} parent=0 // pred_check
    _
  $region23: #{agcn_forward.1} parent=0 // pred_check_branch
    %355 = sbr.rel (0) target = $region25
  $region24: #{agcn_forward.1} parent=0 // pred_region
    _
  $region25: #{agcn_forward.1} parent=0 // pred_fallthru
    _

</llo_original>
